<compile_context>
chip_gen: v5e
topology: v5e:2x2
jax: 0.10.0
libtpu: 0.0.40
codegen_flags: <defaults>
</compile_context>

<pallas_src>
import functools
import math

import jax
import jax.numpy as jnp
from jax.experimental import pallas as pl
from jax.experimental.pallas import tpu as pltpu


_VMEM_LIMIT = 32 * 1024 * 1024   # safe on v5e/v6e (128 MiB) and v7x (64 MiB physical)


# ----------------------------------------------------------------------------
# Pass 1 kernel: reduction over (C, HW) + attention gate.
#   x_ref : (1, Ct, T, HWt)   input block
#   w_ref : (9, T, T)         packed conv-as-matmul weights
#                             [3b+0] = Mq^T, [3b+1] = Mk, [3b+2] = Mv^T, b=0..2
#   g_ref : (1, T, 1)         per-(n, t) gate output (sum of 3 sigmoids)
#   acc_ref: (T, 1)           VMEM accumulator for sum_{c,hw} x
# ----------------------------------------------------------------------------
def _gate_kernel(x_ref, w_ref, g_ref, acc_ref, *, inv):
    c = pl.program_id(1)
    h = pl.program_id(2)
    last_c = pl.num_programs(1) - 1
    last_h = pl.num_programs(2) - 1

    @pl.when((c == 0) & (h == 0))
    def _():
        acc_ref[...] = jnp.zeros_like(acc_ref)

    x = x_ref[0].astype(jnp.float32)                    # (Ct, T, HWt)
    # Reduce C first (plain VPU adds across vregs), then ONE cross-lane
    # reduce over HW (XLU) -- avoids C*T/8 lane reductions.
    s = jnp.sum(x, axis=0)                              # (T, HWt)
    acc_ref[...] += jnp.sum(s, axis=-1, keepdims=True)  # (T, 1)

    @pl.when((c == last_c) & (h == last_h))
    def _():
        T = acc_ref.shape[0]
        y_col = acc_ref[...] * inv                      # (T, 1) mean over C,H,W
        # Row form of y via a tiny masked reduce (no second sweep over x).
        ri = jax.lax.broadcasted_iota(jnp.int32, (T, T), 0)
        ci = jax.lax.broadcasted_iota(jnp.int32, (T, T), 1)
        eye = (ri == ci).astype(jnp.float32)
        y_row = jnp.sum(eye * y_col, axis=0, keepdims=True)        # (1, T)

        gate = jnp.zeros((T, 1), jnp.float32)
        for b in range(3):                              # branches k = 3, 5, 7
            MqT = w_ref[3 * b + 0]                      # (T, T)
            Mk = w_ref[3 * b + 1]                       # (T, T)
            MvT = w_ref[3 * b + 2]                      # (T, T)

            # conv1d as Toeplitz contractions (broadcast-multiply + reduce; VPU)
            q_row = jnp.sum(y_col * MqT, axis=0, keepdims=True)    # (1, T) q[t]
            k_col = jnp.sum(Mk * y_row, axis=1, keepdims=True)     # (T, 1) k[j]
            v_row = jnp.sum(y_col * MvT, axis=0, keepdims=True)    # (1, T) v[t]

            # attention A[t, j] = q[t] * k[j]; stored transposed: attT[j, t]
            attT = k_col * q_row                                   # (T, T)
            attT = attT - jnp.max(attT, axis=0, keepdims=True)
            p = jnp.exp(attT)
            # divide -> EUP reciprocal + multiply (VALU slot freed)
            p = p * pl.reciprocal(jnp.sum(p, axis=0, keepdims=True), approx=True)
            # out[j] = sum_t V[t] * P[t, j]
            out_col = jnp.sum(p * v_row, axis=1, keepdims=True)    # (T, 1)
            gate = gate + jax.nn.sigmoid(out_col)

        g_ref[0] = gate


# ----------------------------------------------------------------------------
# Pass 2 kernel: memory-bound elementwise scale (single fused multiply-store).
#   g_ref : (1, T, 1)
#   x_ref : (1, Ct, T, HWt)
#   o_ref : (1, Ct, T, HWt)
# ----------------------------------------------------------------------------
def _scale_kernel(g_ref, x_ref, o_ref):
    g = g_ref[...]                                      # (1, T, 1)
    o_ref[...] = (x_ref[...] * g[:, None, :, :]).astype(o_ref.dtype)


# ----------------------------------------------------------------------------
# Tiling helpers + wrappers
# ----------------------------------------------------------------------------
def _pick_tile(dim, cap, multiple=1):
    """Largest divisor of `dim` that is <= cap and a multiple of `multiple`;
    falls back to the full dim (full-extent escape hatch)."""
    for t in range(min(dim, cap), 0, -1):
        if dim % t == 0 and t % multiple == 0:
            return t
    return dim


def _tiles(C, T, HW):
    # lane-dense last dim (multiple of 128) when possible, else full HW
    hwt = _pick_tile(HW, 512, 128)
    # keep one x block around ~2 MiB so 2x in + 2x out buffers stay well
    # under the 32 MiB VMEM limit (v7x-safe)
    ct = _pick_tile(C, max(1, (2 * 1024 * 1024) // (T * hwt * 4)))
    return ct, hwt


def _compute_gate(x4, w_pack):
    N, C, T, HW = x4.shape
    ct, hwt = _tiles(C, T, HW)
    grid = (N, C // ct, HW // hwt)
    kernel = functools.partial(_gate_kernel, inv=1.0 / float(C * HW))
    return pl.pallas_call(
        kernel,
        out_shape=jax.ShapeDtypeStruct((N, T, 1), jnp.float32),
        grid=grid,
        in_specs=[
            pl.BlockSpec((1, ct, T, hwt), lambda n, c, h: (n, c, 0, h)),
            pl.BlockSpec((9, T, T), lambda n, c, h: (0, 0, 0)),
        ],
        out_specs=pl.BlockSpec((1, T, 1), lambda n, c, h: (n, 0, 0)),
        scratch_shapes=[pltpu.VMEM((T, 1), jnp.float32)],
        compiler_params=pltpu.CompilerParams(
            dimension_semantics=("parallel", "arbitrary", "arbitrary"),
            vmem_limit_bytes=_VMEM_LIMIT),
    )(x4, w_pack)


def _apply_gate(x4, gate):
    N, C, T, HW = x4.shape
    ct, hwt = _tiles(C, T, HW)
    grid = (N, C // ct, HW // hwt)
    return pl.pallas_call(
        _scale_kernel,
        out_shape=jax.ShapeDtypeStruct((N, C, T, HW), x4.dtype),
        grid=grid,
        in_specs=[
            pl.BlockSpec((1, T, 1), lambda n, c, h: (n, 0, 0)),
            pl.BlockSpec((1, ct, T, hwt), lambda n, c, h: (n, c, 0, h)),
        ],
        out_specs=pl.BlockSpec((1, ct, T, hwt), lambda n, c, h: (n, c, 0, h)),
        compiler_params=pltpu.CompilerParams(
            dimension_semantics=("parallel", "parallel", "parallel"),
            vmem_limit_bytes=_VMEM_LIMIT),
    )(gate, x4)


def bts_attention(x, w_pack):
    """x: (N, C, T, H, W) float32; w_pack: (9, T, T) packed conv matrices."""
    N, C, T, H, W = x.shape
    # TODO(synk): for H*W not a multiple of 128, a padded-HW layout would make
    # the store path fully lane-dense; correctness is unaffected either way.
    x4 = x.reshape(N, C, T, H * W)
    gate = _compute_gate(x4, w_pack)          # (N, T, 1)
    out = _apply_gate(x4, gate)               # (N, C, T, H*W)
    return out.reshape(N, C, T, H, W)


# ----------------------------------------------------------------------------
# Parameter setup (plain JAX glue)
# ----------------------------------------------------------------------------
def _conv1d_toeplitz(w, T):
    """T x T matrix M with (M @ y) == conv1d(y, w, padding=(k-1)//2, no bias)."""
    k = w.shape[0]
    pad = (k - 1) // 2
    t = jnp.arange(T)[:, None]
    s = jnp.arange(T)[None, :]
    idx = s - t + pad
    valid = (idx >= 0) & (idx < k)
    return jnp.where(valid, w[jnp.clip(idx, 0, k - 1)], 0.0).astype(jnp.float32)


def init_params(key):
    """Deterministic Conv1d(1,1,k,bias=False) weights, k in {3,5,7}, Q/K/V each."""
    ks = [3, 3, 3, 5, 5, 5, 7, 7, 7]   # Q1 K1 V1 Q2 K2 V2 Q3 K3 V3
    keys = jax.random.split(key, len(ks))
    weights = []
    for kk, subkey in zip(ks, keys):
        bound = 1.0 / math.sqrt(kk)    # PyTorch default uniform bound (fan_in = k)
        weights.append(jax.random.uniform(subkey, (kk,), jnp.float32, -bound, bound))
    return weights


def pack_weights(weights, T):
    """Pack the 9 conv kernels into the (9, T, T) array the kernel expects."""
    mats = []
    for b in range(3):
        Mq = _conv1d_toeplitz(weights[3 * b + 0], T)
        Mk = _conv1d_toeplitz(weights[3 * b + 1], T)
        Mv = _conv1d_toeplitz(weights[3 * b + 2], T)
        mats += [Mq.T, Mk, Mv.T]
    return jnp.stack(mats, axis=0)     # (9, T, T)


# ----------------------------------------------------------------------------
# Pure-JAX reference (mirrors the PyTorch forward) for verification
# ----------------------------------------------------------------------------
def reference(x, weights):
    N, C, T, H, W = x.shape
    y = jnp.mean(x, axis=(1, 3, 4))                        # (N, T)

    def conv1d(yv, w):
        k = w.shape[0]
        pad = (k - 1) // 2
        yp = jnp.pad(yv, ((0, 0), (pad, pad)))
        cols = [jnp.sum(yp[:, t:t + k] * w, axis=-1) for t in range(T)]
        return jnp.stack(cols, axis=-1)                    # (N, T)

    total = jnp.zeros_like(x)
    for b in range(3):
        q = conv1d(y, weights[3 * b + 0])
        k = conv1d(y, weights[3 * b + 1])
        v = conv1d(y, weights[3 * b + 2])
        A = q[:, :, None] * k[:, None, :]                  # (N, T, T)
        P = jax.nn.softmax(A, axis=-1)
        out = jnp.einsum('nt,ntj->nj', v, P)               # (N, T)
        g = jax.nn.sigmoid(out)
        total = total + x * g[:, None, :, None, None]
    return total


if __name__ == "__main__":
    key = jax.random.PRNGKey(0)
    kx, kw = jax.random.split(key)

    N, C, T, H, W = 2, 4, 8, 16, 16
    x = jax.random.normal(kx, (N, C, T, H, W), jnp.float32)

    weights = init_params(kw)
    w_pack = pack_weights(weights, T)

    out = jax.block_until_ready(bts_attention(x, w_pack))
    ref = jax.block_until_ready(reference(x, weights))

    assert out.shape == (N, C, T, H, W)
    err = jnp.max(jnp.abs(out - ref))
    # tolerance accounts for the EUP approximate reciprocal in the softmax
    assert jnp.allclose(out, ref, atol=1e-3, rtol=1e-3), f"max abs err {err}"

    print("KERNEL_OK")
</pallas_src>

<mosaic_0001>
module attributes {stable_mosaic.version = 11 : i64} {
  func.func @_gate_kernel(%arg0: i32, %arg1: i32, %arg2: i32, %arg3: memref<1x4x8x256xf32, #tpu.memory_space<vmem>>, %arg4: memref<9x8x8xf32, #tpu.memory_space<vmem>>, %arg5: memref<1x8x1xf32, #tpu.memory_space<vmem>>, %arg6: memref<8x1xf32, #tpu.memory_space<vmem>>) attributes {dimension_semantics = [#tpu.dimension_semantics<parallel>, #tpu.dimension_semantics<arbitrary>, #tpu.dimension_semantics<arbitrary>], iteration_bounds = array<i64: 2, 1, 1>, scalar_prefetch = 0 : i64, scratch_operands = 1 : i64, tpu.core_type = #tpu.core_type<tc>, window_params = [{transform_indices = @transform_0, window_bounds = array<i64: 1, 4, 8, 256>}, {pipeline_mode = #tpu.pipeline_mode<synchronous>, transform_indices = @transform_1, window_bounds = array<i64: 9, 8, 8>}, {transform_indices = @transform_2, window_bounds = array<i64: 1, 8, 1>}]} {
    %c0_i32 = arith.constant 0 : i32
    %0 = arith.cmpi eq, %arg1, %c0_i32 : i32
    %c0_i32_0 = arith.constant 0 : i32
    %1 = arith.cmpi eq, %arg2, %c0_i32_0 : i32
    %2 = arith.andi %0, %1 : i1
    %3 = arith.extui %2 : i1 to i32
    %c0_i32_1 = arith.constant 0 : i32
    %4 = arith.cmpi ne, %3, %c0_i32_1 : i32
    scf.if %4 {
      %cst_13 = arith.constant 0.000000e+00 : f32
      %18 = vector.broadcast %cst_13 : f32 to vector<8x1xf32>
      %c0_14 = arith.constant 0 : index
      %c0_15 = arith.constant 0 : index
      %19 = vector.load %arg6[%c0_14, %c0_15] : memref<8x1xf32, #tpu.memory_space<vmem>>, vector<8x1xf32>
      tpu.vector_store %arg6[%c0_14, %c0_15], %18 {strides = array<i32>} : memref<8x1xf32, #tpu.memory_space<vmem>>, vector<8x1xf32>,
    } else {
    }
    %c0 = arith.constant 0 : index
    %c0_2 = arith.constant 0 : index
    %c0_3 = arith.constant 0 : index
    %c0_4 = arith.constant 0 : index
    %5 = vector.load %arg3[%c0, %c0_2, %c0_3, %c0_4] : memref<1x4x8x256xf32, #tpu.memory_space<vmem>>, vector<1x4x8x256xf32>
    %6 = vector.shape_cast %5 : vector<1x4x8x256xf32> to vector<4x8x256xf32>
    %cst = arith.constant dense<0.000000e+00> : vector<8x256xf32>
    %7 = vector.multi_reduction <add>, %6, %cst [0] : vector<4x8x256xf32> to vector<8x256xf32>
    %c0_5 = arith.constant 0 : index
    %c0_6 = arith.constant 0 : index
    %8 = vector.load %arg6[%c0_5, %c0_6] : memref<8x1xf32, #tpu.memory_space<vmem>>, vector<8x1xf32>
    %cst_7 = arith.constant dense<0.000000e+00> : vector<8xf32>
    %9 = vector.multi_reduction <add>, %7, %cst_7 [1] : vector<8x256xf32> to vector<8xf32>
    %10 = vector.shape_cast %9 : vector<8xf32> to vector<8x1xf32>
    %11 = arith.addf %8, %10 : vector<8x1xf32>
    %c0_8 = arith.constant 0 : index
    %c0_9 = arith.constant 0 : index
    %12 = vector.load %arg6[%c0_8, %c0_9] : memref<8x1xf32, #tpu.memory_space<vmem>>, vector<8x1xf32>
    tpu.vector_store %arg6[%c0_8, %c0_9], %11 {strides = array<i32>} : memref<8x1xf32, #tpu.memory_space<vmem>>, vector<8x1xf32>,
    %c0_i32_10 = arith.constant 0 : i32
    %13 = arith.cmpi eq, %arg1, %c0_i32_10 : i32
    %c0_i32_11 = arith.constant 0 : i32
    %14 = arith.cmpi eq, %arg2, %c0_i32_11 : i32
    %15 = arith.andi %13, %14 : i1
    %16 = arith.extui %15 : i1 to i32
    %c0_i32_12 = arith.constant 0 : i32
    %17 = arith.cmpi ne, %16, %c0_i32_12 : i32
    scf.if %17 {
      %c0_13 = arith.constant 0 : index
      %c0_14 = arith.constant 0 : index
      %18 = vector.load %arg6[%c0_13, %c0_14] : memref<8x1xf32, #tpu.memory_space<vmem>>, vector<8x1xf32>
      %cst_15 = arith.constant 9.765625E-4 : f32
      %19 = vector.broadcast %cst_15 : f32 to vector<8x1xf32>
      %20 = arith.mulf %18, %19 : vector<8x1xf32>
      %21 = tpu.iota {dimensions = array<i32: 0>} : vector<8x8xi32>
      %22 = tpu.iota {dimensions = array<i32: 1>} : vector<8x8xi32>
      %23 = arith.cmpi eq, %21, %22 : vector<8x8xi32>
      %24 = arith.extui %23 : vector<8x8xi1> to vector<8x8xi32>
      %25 = arith.sitofp %24 : vector<8x8xi32> to vector<8x8xf32>
      %26 = vector.broadcast %20 : vector<8x1xf32> to vector<8x8xf32>
      %27 = arith.mulf %25, %26 : vector<8x8xf32>
      %cst_16 = arith.constant dense<0.000000e+00> : vector<8xf32>
      %28 = vector.multi_reduction <add>, %27, %cst_16 [0] : vector<8x8xf32> to vector<8xf32>
      %29 = vector.shape_cast %28 : vector<8xf32> to vector<1x8xf32>
      %cst_17 = arith.constant 0.000000e+00 : f32
      %30 = vector.broadcast %cst_17 : f32 to vector<8x1xf32>
      %c0_18 = arith.constant 0 : index
      %c0_19 = arith.constant 0 : index
      %c0_20 = arith.constant 0 : index
      %31 = vector.load %arg4[%c0_18, %c0_19, %c0_20] : memref<9x8x8xf32, #tpu.memory_space<vmem>>, vector<1x8x8xf32>
      %32 = vector.shape_cast %31 : vector<1x8x8xf32> to vector<8x8xf32>
      %c1 = arith.constant 1 : index
      %c0_21 = arith.constant 0 : index
      %c0_22 = arith.constant 0 : index
      %33 = vector.load %arg4[%c1, %c0_21, %c0_22] : memref<9x8x8xf32, #tpu.memory_space<vmem>>, vector<1x8x8xf32>
      %34 = vector.shape_cast %33 : vector<1x8x8xf32> to vector<8x8xf32>
      %c2 = arith.constant 2 : index
      %c0_23 = arith.constant 0 : index
      %c0_24 = arith.constant 0 : index
      %35 = vector.load %arg4[%c2, %c0_23, %c0_24] : memref<9x8x8xf32, #tpu.memory_space<vmem>>, vector<1x8x8xf32>
      %36 = vector.shape_cast %35 : vector<1x8x8xf32> to vector<8x8xf32>
      %37 = vector.broadcast %20 : vector<8x1xf32> to vector<8x8xf32>
      %38 = arith.mulf %37, %32 : vector<8x8xf32>
      %cst_25 = arith.constant dense<0.000000e+00> : vector<8xf32>
      %39 = vector.multi_reduction <add>, %38, %cst_25 [0] : vector<8x8xf32> to vector<8xf32>
      %40 = vector.shape_cast %39 : vector<8xf32> to vector<1x8xf32>
      %41 = vector.broadcast %29 : vector<1x8xf32> to vector<8x8xf32>
      %42 = arith.mulf %34, %41 : vector<8x8xf32>
      %cst_26 = arith.constant dense<0.000000e+00> : vector<8xf32>
      %43 = vector.multi_reduction <add>, %42, %cst_26 [1] : vector<8x8xf32> to vector<8xf32>
      %44 = vector.shape_cast %43 : vector<8xf32> to vector<8x1xf32>
      %45 = vector.broadcast %20 : vector<8x1xf32> to vector<8x8xf32>
      %46 = arith.mulf %45, %36 : vector<8x8xf32>
      %cst_27 = arith.constant dense<0.000000e+00> : vector<8xf32>
      %47 = vector.multi_reduction <add>, %46, %cst_27 [0] : vector<8x8xf32> to vector<8xf32>
      %48 = vector.shape_cast %47 : vector<8xf32> to vector<1x8xf32>
      %49 = vector.broadcast %44 : vector<8x1xf32> to vector<8x8xf32>
      %50 = vector.broadcast %40 : vector<1x8xf32> to vector<8x8xf32>
      %51 = arith.mulf %49, %50 : vector<8x8xf32>
      %cst_28 = arith.constant dense<0xFF800000> : vector<8xf32>
      %52 = vector.multi_reduction <maximumf>, %51, %cst_28 [0] : vector<8x8xf32> to vector<8xf32>
      %53 = vector.shape_cast %52 : vector<8xf32> to vector<1x8xf32>
      %54 = vector.broadcast %53 : vector<1x8xf32> to vector<8x8xf32>
      %55 = arith.subf %51, %54 : vector<8x8xf32>
      %56 = math.exp %55 : vector<8x8xf32>
      %cst_29 = arith.constant dense<0.000000e+00> : vector<8xf32>
      %57 = vector.multi_reduction <add>, %56, %cst_29 [0] : vector<8x8xf32> to vector<8xf32>
      %58 = vector.shape_cast %57 : vector<8xf32> to vector<1x8xf32>
      %59 = tpu.reciprocal %58 {approx = true} : vector<1x8xf32> -> vector<1x8xf32>
      %60 = vector.broadcast %59 : vector<1x8xf32> to vector<8x8xf32>
      %61 = arith.mulf %56, %60 : vector<8x8xf32>
      %62 = vector.broadcast %48 : vector<1x8xf32> to vector<8x8xf32>
      %63 = arith.mulf %61, %62 : vector<8x8xf32>
      %cst_30 = arith.constant dense<0.000000e+00> : vector<8xf32>
      %64 = vector.multi_reduction <add>, %63, %cst_30 [1] : vector<8x8xf32> to vector<8xf32>
      %65 = vector.shape_cast %64 : vector<8xf32> to vector<8x1xf32>
      %66 = arith.negf %65 : vector<8x1xf32>
      %67 = math.exp %66 : vector<8x1xf32>
      %cst_31 = arith.constant 1.000000e+00 : f32
      %68 = vector.broadcast %cst_31 : f32 to vector<8x1xf32>
      %69 = arith.addf %68, %67 : vector<8x1xf32>
      %70 = arith.divf %68, %69 : vector<8x1xf32>
      %71 = arith.addf %30, %70 : vector<8x1xf32>
      %c3 = arith.constant 3 : index
      %c0_32 = arith.constant 0 : index
      %c0_33 = arith.constant 0 : index
      %72 = vector.load %arg4[%c3, %c0_32, %c0_33] : memref<9x8x8xf32, #tpu.memory_space<vmem>>, vector<1x8x8xf32>
      %73 = vector.shape_cast %72 : vector<1x8x8xf32> to vector<8x8xf32>
      %c4 = arith.constant 4 : index
      %c0_34 = arith.constant 0 : index
      %c0_35 = arith.constant 0 : index
      %74 = vector.load %arg4[%c4, %c0_34, %c0_35] : memref<9x8x8xf32, #tpu.memory_space<vmem>>, vector<1x8x8xf32>
      %75 = vector.shape_cast %74 : vector<1x8x8xf32> to vector<8x8xf32>
      %c5 = arith.constant 5 : index
      %c0_36 = arith.constant 0 : index
      %c0_37 = arith.constant 0 : index
      %76 = vector.load %arg4[%c5, %c0_36, %c0_37] : memref<9x8x8xf32, #tpu.memory_space<vmem>>, vector<1x8x8xf32>
      %77 = vector.shape_cast %76 : vector<1x8x8xf32> to vector<8x8xf32>
      %78 = vector.broadcast %20 : vector<8x1xf32> to vector<8x8xf32>
      %79 = arith.mulf %78, %73 : vector<8x8xf32>
      %cst_38 = arith.constant dense<0.000000e+00> : vector<8xf32>
      %80 = vector.multi_reduction <add>, %79, %cst_38 [0] : vector<8x8xf32> to vector<8xf32>
      %81 = vector.shape_cast %80 : vector<8xf32> to vector<1x8xf32>
      %82 = vector.broadcast %29 : vector<1x8xf32> to vector<8x8xf32>
      %83 = arith.mulf %75, %82 : vector<8x8xf32>
      %cst_39 = arith.constant dense<0.000000e+00> : vector<8xf32>
      %84 = vector.multi_reduction <add>, %83, %cst_39 [1] : vector<8x8xf32> to vector<8xf32>
      %85 = vector.shape_cast %84 : vector<8xf32> to vector<8x1xf32>
      %86 = vector.broadcast %20 : vector<8x1xf32> to vector<8x8xf32>
      %87 = arith.mulf %86, %77 : vector<8x8xf32>
      %cst_40 = arith.constant dense<0.000000e+00> : vector<8xf32>
      %88 = vector.multi_reduction <add>, %87, %cst_40 [0] : vector<8x8xf32> to vector<8xf32>
      %89 = vector.shape_cast %88 : vector<8xf32> to vector<1x8xf32>
      %90 = vector.broadcast %85 : vector<8x1xf32> to vector<8x8xf32>
      %91 = vector.broadcast %81 : vector<1x8xf32> to vector<8x8xf32>
      %92 = arith.mulf %90, %91 : vector<8x8xf32>
      %cst_41 = arith.constant dense<0xFF800000> : vector<8xf32>
      %93 = vector.multi_reduction <maximumf>, %92, %cst_41 [0] : vector<8x8xf32> to vector<8xf32>
      %94 = vector.shape_cast %93 : vector<8xf32> to vector<1x8xf32>
      %95 = vector.broadcast %94 : vector<1x8xf32> to vector<8x8xf32>
      %96 = arith.subf %92, %95 : vector<8x8xf32>
      %97 = math.exp %96 : vector<8x8xf32>
      %cst_42 = arith.constant dense<0.000000e+00> : vector<8xf32>
      %98 = vector.multi_reduction <add>, %97, %cst_42 [0] : vector<8x8xf32> to vector<8xf32>
      %99 = vector.shape_cast %98 : vector<8xf32> to vector<1x8xf32>
      %100 = tpu.reciprocal %99 {approx = true} : vector<1x8xf32> -> vector<1x8xf32>
      %101 = vector.broadcast %100 : vector<1x8xf32> to vector<8x8xf32>
      %102 = arith.mulf %97, %101 : vector<8x8xf32>
      %103 = vector.broadcast %89 : vector<1x8xf32> to vector<8x8xf32>
      %104 = arith.mulf %102, %103 : vector<8x8xf32>
      %cst_43 = arith.constant dense<0.000000e+00> : vector<8xf32>
      %105 = vector.multi_reduction <add>, %104, %cst_43 [1] : vector<8x8xf32> to vector<8xf32>
      %106 = vector.shape_cast %105 : vector<8xf32> to vector<8x1xf32>
      %107 = arith.negf %106 : vector<8x1xf32>
      %108 = math.exp %107 : vector<8x1xf32>
      %cst_44 = arith.constant 1.000000e+00 : f32
      %109 = vector.broadcast %cst_44 : f32 to vector<8x1xf32>
      %110 = arith.addf %109, %108 : vector<8x1xf32>
      %111 = arith.divf %109, %110 : vector<8x1xf32>
      %112 = arith.addf %71, %111 : vector<8x1xf32>
      %c6 = arith.constant 6 : index
      %c0_45 = arith.constant 0 : index
      %c0_46 = arith.constant 0 : index
      %113 = vector.load %arg4[%c6, %c0_45, %c0_46] : memref<9x8x8xf32, #tpu.memory_space<vmem>>, vector<1x8x8xf32>
      %114 = vector.shape_cast %113 : vector<1x8x8xf32> to vector<8x8xf32>
      %c7 = arith.constant 7 : index
      %c0_47 = arith.constant 0 : index
      %c0_48 = arith.constant 0 : index
      %115 = vector.load %arg4[%c7, %c0_47, %c0_48] : memref<9x8x8xf32, #tpu.memory_space<vmem>>, vector<1x8x8xf32>
      %116 = vector.shape_cast %115 : vector<1x8x8xf32> to vector<8x8xf32>
      %c8 = arith.constant 8 : index
      %c0_49 = arith.constant 0 : index
      %c0_50 = arith.constant 0 : index
      %117 = vector.load %arg4[%c8, %c0_49, %c0_50] : memref<9x8x8xf32, #tpu.memory_space<vmem>>, vector<1x8x8xf32>
      %118 = vector.shape_cast %117 : vector<1x8x8xf32> to vector<8x8xf32>
      %119 = vector.broadcast %20 : vector<8x1xf32> to vector<8x8xf32>
      %120 = arith.mulf %119, %114 : vector<8x8xf32>
      %cst_51 = arith.constant dense<0.000000e+00> : vector<8xf32>
      %121 = vector.multi_reduction <add>, %120, %cst_51 [0] : vector<8x8xf32> to vector<8xf32>
      %122 = vector.shape_cast %121 : vector<8xf32> to vector<1x8xf32>
      %123 = vector.broadcast %29 : vector<1x8xf32> to vector<8x8xf32>
      %124 = arith.mulf %116, %123 : vector<8x8xf32>
      %cst_52 = arith.constant dense<0.000000e+00> : vector<8xf32>
      %125 = vector.multi_reduction <add>, %124, %cst_52 [1] : vector<8x8xf32> to vector<8xf32>
      %126 = vector.shape_cast %125 : vector<8xf32> to vector<8x1xf32>
      %127 = vector.broadcast %20 : vector<8x1xf32> to vector<8x8xf32>
      %128 = arith.mulf %127, %118 : vector<8x8xf32>
      %cst_53 = arith.constant dense<0.000000e+00> : vector<8xf32>
      %129 = vector.multi_reduction <add>, %128, %cst_53 [0] : vector<8x8xf32> to vector<8xf32>
      %130 = vector.shape_cast %129 : vector<8xf32> to vector<1x8xf32>
      %131 = vector.broadcast %126 : vector<8x1xf32> to vector<8x8xf32>
      %132 = vector.broadcast %122 : vector<1x8xf32> to vector<8x8xf32>
      %133 = arith.mulf %131, %132 : vector<8x8xf32>
      %cst_54 = arith.constant dense<0xFF800000> : vector<8xf32>
      %134 = vector.multi_reduction <maximumf>, %133, %cst_54 [0] : vector<8x8xf32> to vector<8xf32>
      %135 = vector.shape_cast %134 : vector<8xf32> to vector<1x8xf32>
      %136 = vector.broadcast %135 : vector<1x8xf32> to vector<8x8xf32>
      %137 = arith.subf %133, %136 : vector<8x8xf32>
      %138 = math.exp %137 : vector<8x8xf32>
      %cst_55 = arith.constant dense<0.000000e+00> : vector<8xf32>
      %139 = vector.multi_reduction <add>, %138, %cst_55 [0] : vector<8x8xf32> to vector<8xf32>
      %140 = vector.shape_cast %139 : vector<8xf32> to vector<1x8xf32>
      %141 = tpu.reciprocal %140 {approx = true} : vector<1x8xf32> -> vector<1x8xf32>
      %142 = vector.broadcast %141 : vector<1x8xf32> to vector<8x8xf32>
      %143 = arith.mulf %138, %142 : vector<8x8xf32>
      %144 = vector.broadcast %130 : vector<1x8xf32> to vector<8x8xf32>
      %145 = arith.mulf %143, %144 : vector<8x8xf32>
      %cst_56 = arith.constant dense<0.000000e+00> : vector<8xf32>
      %146 = vector.multi_reduction <add>, %145, %cst_56 [1] : vector<8x8xf32> to vector<8xf32>
      %147 = vector.shape_cast %146 : vector<8xf32> to vector<8x1xf32>
      %148 = arith.negf %147 : vector<8x1xf32>
      %149 = math.exp %148 : vector<8x1xf32>
      %cst_57 = arith.constant 1.000000e+00 : f32
      %150 = vector.broadcast %cst_57 : f32 to vector<8x1xf32>
      %151 = arith.addf %150, %149 : vector<8x1xf32>
      %152 = arith.divf %150, %151 : vector<8x1xf32>
      %153 = arith.addf %112, %152 : vector<8x1xf32>
      %c0_58 = arith.constant 0 : index
      %c0_59 = arith.constant 0 : index
      %c0_60 = arith.constant 0 : index
      %154 = vector.load %arg5[%c0_58, %c0_59, %c0_60] : memref<1x8x1xf32, #tpu.memory_space<vmem>>, vector<1x8x1xf32>
      %155 = vector.shape_cast %154 : vector<1x8x1xf32> to vector<8x1xf32>
      %156 = vector.shape_cast %153 : vector<8x1xf32> to vector<1x8x1xf32>
      tpu.vector_store %arg5[%c0_58, %c0_59, %c0_60], %156 {strides = array<i32>} : memref<1x8x1xf32, #tpu.memory_space<vmem>>, vector<1x8x1xf32>,
    } else {
    }
    return
  }
  func.func @transform_0(%arg0: i32, %arg1: i32, %arg2: i32) -> (i32, i32, i32, i32) {
    %c0_i32 = arith.constant 0 : i32
    %c0_i32_0 = arith.constant 0 : i32
    return %arg0, %arg1, %c0_i32, %arg2 : i32, i32, i32, i32
  }
  func.func @transform_1(%arg0: i32, %arg1: i32, %arg2: i32) -> (i32, i32, i32) {
    %c0_i32 = arith.constant 0 : i32
    %c0_i32_0 = arith.constant 0 : i32
    %c0_i32_1 = arith.constant 0 : i32
    %c0_i32_2 = arith.constant 0 : i32
    return %c0_i32, %c0_i32_0, %c0_i32_1 : i32, i32, i32
  }
  func.func @transform_2(%arg0: i32, %arg1: i32, %arg2: i32) -> (i32, i32, i32) {
    %c0_i32 = arith.constant 0 : i32
    %c0_i32_0 = arith.constant 0 : i32
    %c0_i32_1 = arith.constant 0 : i32
    return %arg0, %c0_i32, %c0_i32_0 : i32, i32, i32
  }
}

</mosaic_0001>

<llo_original>
// kernel: tpu_custom_call.1
$region0: #{tpu_custom_call.1}
  #allocation0 [shape = 'u32[]', space=smem, size = 0x4, offset = 0x4, fixed_abs, tag = 'smem constant byte address 0x4 - core index']
  #allocation1 [shape = 'u32[72,128]{1,0:T(1,128)}', space=vmem, size = 0x9000, scoped, tag = 'internal scratch']
  #allocation2 [shape = 'f32[8,1]{1,0:T(8,128)}', space=vmem, size = 0x1000, scoped, tag = 'scratch operand']
  %s0 = inlined_call_operand.vmem [shape: f32[2,4,8,256], index: 0, kind: input, shape index: {}]
  %s1 = inlined_call_operand.vmem [shape: f32[9,8,8], index: 1, kind: input, shape index: {}]
  %s2 = inlined_call_operand.vmem [shape: f32[2,8,1], index: 2, kind: output, shape index: {}]
  %s3 = sld [smem:[#allocation0]]
  $region49: #{tpu_custom_call.1} parent=0
    _
  %s5 = ssub.s32 1, %s3
  %s6 = scalar_select 0, %s5, %s3
  loop: start=0, step=1, limit=4
  $region2: #{tpu_custom_call.1} parent=0 // loop_pre_header
    _
  $region3: #{tpu_custom_call.1} parent=0 // loop_header
    %s8 = sphi 0, %s12
    %p9 = scmp.ge.s32.totalorder %s8, 4
    %s15 = sphi 0, %s34
    %s16 = sphi 0, %s30
    %s17 = sphi 0, %s26
    %s18 = sphi 0, %s15
    %s19 = sphi 0, %s16
    %s20 = sphi 0, %s17
    %s21 = sphi 0, %s18
    %s22 = sphi 0, %s19
    %s23 = sphi 0, %s20
    %s41 = sphi 0, %s43
    %s44 = sphi 0, %s41
    %s45 = sphi 0, %s44
    %s61 = sphi 0, %s45
    %s65 = sphi 0, %s65
    %s67 = sphi 0, %s65
    %s68 = sphi 0, %s67
    %s82 = sphi 0, %s68
    %s88 = sphi 0, %s90
    %s91 = sphi 0, %s88
    %s92 = sphi 0, %s91
    %s108 = sphi 0, %s92
  $region4: #{tpu_custom_call.1} parent=0 // loop_header_branch
    %11 = sbr.rel (%p9) target = $region8
  $region5: #{tpu_custom_call.1} parent=0 // loop_body
    %s13 = ssub.s32 %s8, 1
    %s14 = ssub.s32 %s8, 2
    %s24 = sadd.s32 1, %s17
    %p25 = scmp.ge.s32.totalorder %s24, 1
    %s26 = scalar_select %p25, 0, %s24
    %s27 = sadd.s32 1, %s16
    %s28 = scalar_select %p25, %s27, %s16
    %p29 = scmp.ge.s32.totalorder %s28, 1
    %s30 = scalar_select %p29, 0, %s28
    %s31 = sadd.s32 1, %s15
    %s32 = scalar_select %p29, %s31, %s15
    %p33 = scmp.ge.s32.totalorder %s32, 2
    %s34 = scalar_select %p33, 0, %s32
    %s35 = ssub.s32 %s15, %s34
    %s36 = ssub.s32 %s16, %s30
    %s37 = sor.u32 %s35, %s36
    %s38 = ssub.s32 %s17, %s26
    %s39 = sor.u32 %s37, %s38
    %p40 = scmp.eq.s32.totalorder %s39, 0
    %s42 = sadd.s32 %s41, 1
    %s43 = scalar_select %p40, %s41, %s42
    %p46 = pneg %p40
    %p47 = scmp.eq.s32.totalorder %s8, 1
    %p48 = por %p46, %p47
    %p49 = scmp.ne.s32.totalorder %s41, %s44
    %p50 = scmp.eq.s32.totalorder %s8, 0
    %p51 = por %p49, %p50
    %p52 = scmp.ne.s32.totalorder %s41, %s44
    %p53 = scmp.eq.s32.totalorder %s13, 1
    %p54 = por %p52, %p53
    %p55 = scmp.ne.s32.totalorder %s44, %s45
    %p56 = scmp.eq.s32.totalorder %s13, 0
    %p57 = por %p55, %p56
    %p58 = scmp.ne.s32.totalorder %s44, %s45
    %p59 = scmp.eq.s32.totalorder %s14, 1
    %p60 = por %p58, %p59
    %p62 = scmp.ne.s32.totalorder %s45, %s61
    %p63 = scmp.eq.s32.totalorder %s14, 0
    %p64 = por %p62, %p63
    %s66 = sadd.s32 %s65, 1
    %p69 = scmp.eq.s32.totalorder %s8, 1
    %p70 = scmp.ne.s32.totalorder %s65, %s67
    %p71 = scmp.eq.s32.totalorder %s8, 0
    %p72 = por %p70, %p71
    %p73 = scmp.ne.s32.totalorder %s65, %s67
    %p74 = scmp.eq.s32.totalorder %s13, 1
    %p75 = por %p73, %p74
    %p76 = scmp.ne.s32.totalorder %s67, %s68
    %p77 = scmp.eq.s32.totalorder %s13, 0
    %p78 = por %p76, %p77
    %p79 = scmp.ne.s32.totalorder %s67, %s68
    %p80 = scmp.eq.s32.totalorder %s14, 1
    %p81 = por %p79, %p80
    %p83 = scmp.ne.s32.totalorder %s68, %s82
    %p84 = scmp.eq.s32.totalorder %s14, 0
    %p85 = por %p83, %p84
    %s86 = ssub.s32 %s15, %s34
    %p87 = scmp.eq.s32.totalorder %s86, 0
    %s89 = sadd.s32 %s88, 1
    %s90 = scalar_select %p87, %s88, %s89
    %p93 = pneg %p87
    %p94 = scmp.eq.s32.totalorder %s8, 1
    %p95 = por %p93, %p94
    %p96 = scmp.ne.s32.totalorder %s88, %s91
    %p97 = scmp.eq.s32.totalorder %s8, 0
    %p98 = por %p96, %p97
    %p99 = scmp.ne.s32.totalorder %s88, %s91
    %p100 = scmp.eq.s32.totalorder %s13, 1
    %p101 = por %p99, %p100
    %p102 = scmp.ne.s32.totalorder %s91, %s92
    %p103 = scmp.eq.s32.totalorder %s13, 0
    %p104 = por %p102, %p103
    %p105 = scmp.ne.s32.totalorder %s91, %s92
    %p106 = scmp.eq.s32.totalorder %s14, 1
    %p107 = por %p105, %p106
    %p109 = scmp.ne.s32.totalorder %s92, %s108
    %p110 = scmp.eq.s32.totalorder %s14, 0
    %p111 = por %p109, %p110
    %p112 = scmp.le.s32.totalorder 1, %s8
    %p113 = scmp.lt.s32.totalorder %s8, 3
    %p114 = pnand %p112, %p113
    %p115 = pneg %p114
    // Predicated region
    $region9: #{tpu_custom_call.1} parent=5 // pred_check
      _
    $region10: #{tpu_custom_call.1} parent=5 // pred_check_branch
      %117 = sbr.rel (%p114) target = $region12
    $region11: #{tpu_custom_call.1} parent=5 // pred_region
      %s118 = ssub.s32 %s8, 1
      // Predicated region
      $region13: #{tpu_custom_call.1} parent=11 // pred_check
        %p119 = pneg %p78
      $region14: #{tpu_custom_call.1} parent=11 // pred_check_branch
        %121 = sbr.rel (%p119) target = $region16
      $region15: #{tpu_custom_call.1} parent=11 // pred_region
        _
      $region16: #{tpu_custom_call.1} parent=11 // pred_fallthru
        _
    $region12: #{tpu_custom_call.1} parent=5 // pred_fallthru
      _
    %p122 = scmp.lt.s32.totalorder %s8, 2
    // Predicated region
    $region17: #{tpu_custom_call.1} parent=5 // pred_check
      %p123 = pneg %p122
    $region18: #{tpu_custom_call.1} parent=5 // pred_check_branch
      %125 = sbr.rel (%p123) target = $region20
    $region19: #{tpu_custom_call.1} parent=5 // pred_region
      // Predicated region
      $region21: #{tpu_custom_call.1} parent=19 // pred_check
        %p126 = pneg %p51
      $region22: #{tpu_custom_call.1} parent=19 // pred_check_branch
        %128 = sbr.rel (%p126) target = $region24
      $region23: #{tpu_custom_call.1} parent=19 // pred_region
        %s129 = smul.u32 4, %s16
        %s130 = smul.u32 2, %s17
        %p131 = scmp.lt.s32.totalorder %s15, 1
        %s132 = scalar_select %p131, %s15, 1
        %p133 = scmp.lt.s32.totalorder %s129, 3
        %s134 = scalar_select %p133, %s129, 3
        %p135 = scmp.lt.s32.totalorder %s130, 1
        %s136 = scalar_select %p135, %s130, 1
        %s137 = smul.addr %s134, 2
        %s138 = sadd.s32 %s136, %s137
        %s139 = smul.addr %s132, 8
        %s140 = sadd.s32 %s138, %s139
        %s141 = smul.addr %s140, 8
        %s142 = scalar_lea.vmem %s0, %s141
        %s143 = smul.u32 4, %s16
        %s144 = smul.u32 2, %s17
      $region24: #{tpu_custom_call.1} parent=19 // pred_fallthru
        _
    $region20: #{tpu_custom_call.1} parent=5 // pred_fallthru
      _
    %p145 = scmp.le.s32.totalorder 1, %s8
    %p146 = scmp.lt.s32.totalorder %s8, 3
    %p147 = pnand %p145, %p146
    %p148 = pneg %p147
    // Predicated region
    $region25: #{tpu_custom_call.1} parent=5 // pred_check
      _
    $region26: #{tpu_custom_call.1} parent=5 // pred_check_branch
      %150 = sbr.rel (%p147) target = $region28
    $region27: #{tpu_custom_call.1} parent=5 // pred_region
      %s151 = ssub.s32 %s8, 1
      %s152 = smul.u32 4, %s19
      %s153 = smul.u32 2, %s20
      %p154 = scmp.lt.s32.totalorder %s18, 1
      %s155 = scalar_select %p154, %s18, 1
      %p156 = scmp.lt.s32.totalorder %s152, 3
      %s157 = scalar_select %p156, %s152, 3
      %p158 = scmp.lt.s32.totalorder %s153, 1
      %s159 = scalar_select %p158, %s153, 1
      %s160 = smul.addr %s157, 2
      %s161 = sadd.s32 %s159, %s160
      %s162 = smul.addr %s155, 8
      %s163 = sadd.s32 %s161, %s162
      %s164 = smul.addr %s163, 8
      %s165 = scalar_lea.vmem %s0, %s164
      %p166 = pneg %p57
      %p167 = pneg %p54
      %p168 = pneg %p78
      %p169 = pneg %p75
      %p170 = pneg %p104
      %p171 = pneg %p101
      %p172 = scmp.lt.s32.totalorder %s18, 1
      %s173 = scalar_select %p172, %s18, 1
      %s174 = smul.addr %s173, 8
      %s175 = scalar_lea.vmem %s2, %s174
      %s176 = smul.u32 4, %s19
      %s177 = smul.u32 2, %s20
      %p178 = scmp.lt.s32.totalorder %s18, 1
      %s179 = scalar_select %p178, %s18, 1
      %p180 = scmp.lt.s32.totalorder %s176, 3
      %s181 = scalar_select %p180, %s176, 3
      %p182 = scmp.lt.s32.totalorder %s177, 1
      %s183 = scalar_select %p182, %s177, 1
      %s184 = smul.addr %s181, 2
      %s185 = sadd.s32 %s183, %s184
      %s186 = smul.addr %s179, 8
      %s187 = sadd.s32 %s185, %s186
      %s188 = smul.addr %s187, 8
      %s189 = scalar_lea.vmem %s0, %s188
      %s190 = smul.u32 4, %s19
      %s191 = smul.u32 2, %s20
      %p192 = scmp.lt.s32.totalorder %s18, 1
      %s193 = scalar_select %p192, %s18, 1
      %s194 = smul.addr %s193, 8
      %s195 = scalar_lea.vmem %s2, %s194
      %p196 = scmp.eq.s32.totalorder %s19, 0
      %p197 = scmp.eq.s32.totalorder %s20, 0
      %p198 = pnand %p196, %p197
      %p199 = pneg %p198
      // Predicated region
      $region29: #{tpu_custom_call.1} parent=27 // pred_check
        _
      $region30: #{tpu_custom_call.1} parent=27 // pred_check_branch
        %201 = sbr.rel (%p198) target = $region32
      $region31: #{tpu_custom_call.1} parent=27 // pred_region
        %vm202 = vcmask 7168
        %203 = vst.msk [vmem:[#allocation2] sm:$0xff] %vm202, 0.0
      $region32: #{tpu_custom_call.1} parent=27 // pred_fallthru
        _
      %v204 = vld [vmem:[%s189] sm:$0xff]
      %v205 = vld [vmem:[%s189 + $0x8] sm:$0xff]
      %v206 = vld [vmem:[%s189 + $0x10] sm:$0xff]
      %v207 = vld [vmem:[%s189 + $0x18] sm:$0xff]
      %v208 = vld [vmem:[%s189 + $0x20] sm:$0xff]
      %v209 = vld [vmem:[%s189 + $0x28] sm:$0xff]
      %v210 = vld [vmem:[%s189 + $0x30] sm:$0xff]
      %v211 = vld [vmem:[%s189 + $0x38] sm:$0xff]
      %v212 = vadd.f32 %v204, %v206
      %v213 = vadd.f32 %v212, %v208
      %v214 = vadd.f32 %v213, %v210
      %v215 = vadd.f32 %v205, %v207
      %v216 = vadd.f32 %v215, %v209
      %v217 = vadd.f32 %v216, %v211
      %v218 = vld [vmem:[#allocation2] sm:$0xff]
      %v219 = vadd.f32 %v214, %v217
      %220 = vadd.xlane.f32.xlu0 %v219
      %v221 = vpop.xlane.xlu0 %220
      %v222 = vadd.f32 %v218, %v221
      %vm223 = vcmask 7168
      %224 = vst.msk [vmem:[#allocation2] sm:$0xff] %vm223, %v222
      // Predicated region
      $region33: #{tpu_custom_call.1} parent=27 // pred_check
        _
      $region34: #{tpu_custom_call.1} parent=27 // pred_check_branch
        %226 = sbr.rel (%p198) target = $region36
      $region35: #{tpu_custom_call.1} parent=27 // pred_region
        %v227 = vld [vmem:[#allocation2] sm:$0xff]
        %v228 = vmul.f32 %v227, 0.0009765625
        %v229 = vlaneseq
        %v230 = vshrl.u32 %v229, 7
        %v231 = vlaneseq
        %v232 = vand.u32 %v231, 127
        %vm233 = vcmp.eq.s32.totalorder %v230, %v232
        %v234 = vsel %vm233, 1, 0
        %v235 = vcvt.s32.f32 %v234
        %237 = vset.pattern.permute.xlu0 0
        %238 = vperm.xlu0 %237, %v228
        %v239 = vpop.permute.xlu0 %238
        %v241 = vmul.f32 %v235, %v239
        %vm242 = vcmask 64512
        %v243 = vsel %vm242, %v241, 0.0
        %v244 = vrot.slane %v243, 4
        %v245 = vadd.f32 %v243, %v244
        %v246 = vrot.slane %v245, 2
        %v247 = vadd.f32 %v245, %v246
        %v248 = vrot.slane %v247, 1
        %v249 = vadd.f32 %v247, %v248
        %v250 = vld [vmem:[%s1] sm:$0xff]
        %s251 = scalar_lea.vmem %s1, 8
        %v252 = vld [vmem:[%s251] sm:$0xff]
        %s253 = scalar_lea.vmem %s1, 16
        %v254 = vld [vmem:[%s253] sm:$0xff]
        %v255 = vmul.f32 %v239, %v250
        %v256 = vsel %vm242, %v255, 0.0
        %v257 = vrot.slane %v256, 4
        %v258 = vadd.f32 %v256, %v257
        %v259 = vrot.slane %v258, 2
        %v260 = vadd.f32 %v258, %v259
        %v261 = vrot.slane %v260, 1
        %v262 = vadd.f32 %v260, %v261
        %v263 = vmul.f32 %v252, %v249
        %v264 = vsel %vm242, %v263, 0.0
        %265 = vadd.xlane.f32.xlu0 %v264
        %v266 = vpop.xlane.xlu0 %265
        %v267 = vmul.f32 %v239, %v254
        %v268 = vsel %vm242, %v267, 0.0
        %v269 = vrot.slane %v268, 4
        %v270 = vadd.f32 %v268, %v269
        %v271 = vrot.slane %v270, 2
        %v272 = vadd.f32 %v270, %v271
        %v273 = vrot.slane %v272, 1
        %v274 = vadd.f32 %v272, %v273
        %v275 = vmul.f32 %v266, %v262
        %v276 = vsel %vm242, %v275, -inf
        %v277 = vrot.slane %v276, 4
        %v278 = vmax.f32 %v276, %v277
        %v279 = vrot.slane %v278, 2
        %v280 = vmax.f32 %v278, %v279
        %v281 = vrot.slane %v280, 1
        %v282 = vmax.f32 %v280, %v281
        %v283 = vsub.f32 %v275, %v282
        %v284 = vmul.f32 %v283, 1.442695
        %v285 = vpow.pop %v284
        %v286 = vsel %vm242, %v285, 0.0
        %v287 = vrot.slane %v286, 4
        %v288 = vadd.f32 %v286, %v287
        %v289 = vrot.slane %v288, 2
        %v290 = vadd.f32 %v288, %v289
        %v291 = vrot.slane %v290, 1
        %v292 = vadd.f32 %v290, %v291
        %v293 = vrcp.pop %v292
        %v294 = vmul.f32 %v285, %v293
        %v295 = vmul.f32 %v294, %v274
        %v296 = vsel %vm242, %v295, 0.0
        %297 = vadd.xlane.f32.xlu0 %v296
        %v298 = vpop.xlane.xlu0 %297
        %v299 = vxor.u32 %v298, 2147483648
        %v300 = vmul.f32 %v299, 1.442695
        %v301 = vpow.pop %v300
        %v302 = vadd.f32 %v301, 1.0
        %v303 = vrcp.pop %v302
        %v304 = vmul.f32 %v302, %v303
        %v305 = vsub.f32 1.0, %v304
        %v306 = vmul.f32 %v303, %v305
        %v307 = vadd.f32 %v303, %v306
        %vm308 = vweird.f32 %v302
        %vm309 = vweird.f32 %v303
        %vm310 = vmor %vm308, %vm309
        %v311 = vsel %vm310, %v303, %v307
        %v312 = vand.u32 2147483647, %v302
        %vm313 = vcmp.eq.f32.partialorder %v312, 8.507059e+37
        %v314 = vand.u32 %v302, 2147483648
        %v315 = vor.u32 1.1754944e-38, %v314
        %v316 = vsel %vm313, %v315, %v311
        %v317 = vmul.f32 1.0, %v316
        %v318 = vadd.f32 %v317, 0.0
        %s319 = scalar_lea.vmem %s1, 24
        %v320 = vld [vmem:[%s319] sm:$0xff]
        %s321 = scalar_lea.vmem %s1, 32
        %v322 = vld [vmem:[%s321] sm:$0xff]
        %s323 = scalar_lea.vmem %s1, 40
        %v324 = vld [vmem:[%s323] sm:$0xff]
        %v325 = vmul.f32 %v239, %v320
        %v326 = vsel %vm242, %v325, 0.0
        %v327 = vrot.slane %v326, 4
        %v328 = vadd.f32 %v326, %v327
        %v329 = vrot.slane %v328, 2
        %v330 = vadd.f32 %v328, %v329
        %v331 = vrot.slane %v330, 1
        %v332 = vadd.f32 %v330, %v331
        %v333 = vmul.f32 %v322, %v249
        %v334 = vsel %vm242, %v333, 0.0
        %335 = vadd.xlane.f32.xlu0 %v334
        %v336 = vpop.xlane.xlu0 %335
        %v337 = vmul.f32 %v239, %v324
        %v338 = vsel %vm242, %v337, 0.0
        %v339 = vrot.slane %v338, 4
        %v340 = vadd.f32 %v338, %v339
        %v341 = vrot.slane %v340, 2
        %v342 = vadd.f32 %v340, %v341
        %v343 = vrot.slane %v342, 1
        %v344 = vadd.f32 %v342, %v343
        %v345 = vmul.f32 %v336, %v332
        %v346 = vsel %vm242, %v345, -inf
        %v347 = vrot.slane %v346, 4
        %v348 = vmax.f32 %v346, %v347
        %v349 = vrot.slane %v348, 2
        %v350 = vmax.f32 %v348, %v349
        %v351 = vrot.slane %v350, 1
        %v352 = vmax.f32 %v350, %v351
        %v353 = vsub.f32 %v345, %v352
        %v354 = vmul.f32 %v353, 1.442695
        %v355 = vpow.pop %v354
        %v356 = vsel %vm242, %v355, 0.0
        %v357 = vrot.slane %v356, 4
        %v358 = vadd.f32 %v356, %v357
        %v359 = vrot.slane %v358, 2
        %v360 = vadd.f32 %v358, %v359
        %v361 = vrot.slane %v360, 1
        %v362 = vadd.f32 %v360, %v361
        %v363 = vrcp.pop %v362
        %v364 = vmul.f32 %v355, %v363
        %v365 = vmul.f32 %v364, %v344
        %v366 = vsel %vm242, %v365, 0.0
        %367 = vadd.xlane.f32.xlu0 %v366
        %v368 = vpop.xlane.xlu0 %367
        %v369 = vxor.u32 %v368, 2147483648
        %v370 = vmul.f32 %v369, 1.442695
        %v371 = vpow.pop %v370
        %v372 = vadd.f32 %v371, 1.0
        %v373 = vrcp.pop %v372
        %v374 = vmul.f32 %v372, %v373
        %v375 = vsub.f32 1.0, %v374
        %v376 = vmul.f32 %v373, %v375
        %v377 = vadd.f32 %v373, %v376
        %vm378 = vweird.f32 %v372
        %vm379 = vweird.f32 %v373
        %vm380 = vmor %vm378, %vm379
        %v381 = vsel %vm380, %v373, %v377
        %v382 = vand.u32 2147483647, %v372
        %vm383 = vcmp.eq.f32.partialorder %v382, 8.507059e+37
        %v384 = vand.u32 %v372, 2147483648
        %v385 = vor.u32 1.1754944e-38, %v384
        %v386 = vsel %vm383, %v385, %v381
        %v387 = vmul.f32 1.0, %v386
        %v388 = vadd.f32 %v318, %v387
        %s389 = scalar_lea.vmem %s1, 48
        %v390 = vld [vmem:[%s389] sm:$0xff]
        %s391 = scalar_lea.vmem %s1, 56
        %v392 = vld [vmem:[%s391] sm:$0xff]
        %s393 = scalar_lea.vmem %s1, 64
        %v394 = vld [vmem:[%s393] sm:$0xff]
        %v395 = vmul.f32 %v239, %v390
        %v396 = vsel %vm242, %v395, 0.0
        %v397 = vrot.slane %v396, 4
        %v398 = vadd.f32 %v396, %v397
        %v399 = vrot.slane %v398, 2
        %v400 = vadd.f32 %v398, %v399
        %v401 = vrot.slane %v400, 1
        %v402 = vadd.f32 %v400, %v401
        %v403 = vmul.f32 %v392, %v249
        %v404 = vsel %vm242, %v403, 0.0
        %405 = vadd.xlane.f32.xlu0 %v404
        %v406 = vpop.xlane.xlu0 %405
        %v407 = vmul.f32 %v239, %v394
        %v408 = vsel %vm242, %v407, 0.0
        %v409 = vrot.slane %v408, 4
        %v410 = vadd.f32 %v408, %v409
        %v411 = vrot.slane %v410, 2
        %v412 = vadd.f32 %v410, %v411
        %v413 = vrot.slane %v412, 1
        %v414 = vadd.f32 %v412, %v413
        %v415 = vmul.f32 %v406, %v402
        %v416 = vsel %vm242, %v415, -inf
        %v417 = vrot.slane %v416, 4
        %v418 = vmax.f32 %v416, %v417
        %v419 = vrot.slane %v418, 2
        %v420 = vmax.f32 %v418, %v419
        %v421 = vrot.slane %v420, 1
        %v422 = vmax.f32 %v420, %v421
        %v423 = vsub.f32 %v415, %v422
        %v424 = vmul.f32 %v423, 1.442695
        %v425 = vpow.pop %v424
        %v426 = vsel %vm242, %v425, 0.0
        %v427 = vrot.slane %v426, 4
        %v428 = vadd.f32 %v426, %v427
        %v429 = vrot.slane %v428, 2
        %v430 = vadd.f32 %v428, %v429
        %v431 = vrot.slane %v430, 1
        %v432 = vadd.f32 %v430, %v431
        %v433 = vrcp.pop %v432
        %v434 = vmul.f32 %v425, %v433
        %v435 = vmul.f32 %v434, %v414
        %v436 = vsel %vm242, %v435, 0.0
        %437 = vadd.xlane.f32.xlu0 %v436
        %v438 = vpop.xlane.xlu0 %437
        %v439 = vxor.u32 %v438, 2147483648
        %v440 = vmul.f32 %v439, 1.442695
        %v441 = vpow.pop %v440
        %v442 = vadd.f32 %v441, 1.0
        %v443 = vrcp.pop %v442
        %v444 = vmul.f32 %v442, %v443
        %v445 = vsub.f32 1.0, %v444
        %v446 = vmul.f32 %v443, %v445
        %v447 = vadd.f32 %v443, %v446
        %vm448 = vweird.f32 %v442
        %vm449 = vweird.f32 %v443
        %vm450 = vmor %vm448, %vm449
        %v451 = vsel %vm450, %v443, %v447
        %v452 = vand.u32 2147483647, %v442
        %vm453 = vcmp.eq.f32.partialorder %v452, 8.507059e+37
        %v454 = vand.u32 %v442, 2147483648
        %v455 = vor.u32 1.1754944e-38, %v454
        %v456 = vsel %vm453, %v455, %v451
        %v457 = vmul.f32 1.0, %v456
        %v458 = vadd.f32 %v388, %v457
        %459 = vst.msk [vmem:[%s195] sm:$0xff] %vm223, %v458
      $region36: #{tpu_custom_call.1} parent=27 // pred_fallthru
        _
      %p460 = scmp.lt.s32.totalorder %s18, 1
      %s461 = scalar_select %p460, %s18, 1
      %s462 = smul.addr %s461, 8
      %s463 = scalar_lea.vmem %s2, %s462
      // Predicated region
      $region37: #{tpu_custom_call.1} parent=27 // pred_check
        %p464 = pneg %p101
      $region38: #{tpu_custom_call.1} parent=27 // pred_check_branch
        %466 = sbr.rel (%p464) target = $region40
      $region39: #{tpu_custom_call.1} parent=27 // pred_region
        _
      $region40: #{tpu_custom_call.1} parent=27 // pred_fallthru
        _
    $region28: #{tpu_custom_call.1} parent=5 // pred_fallthru
      _
    %p467 = scmp.le.s32.totalorder 2, %s8
    // Predicated region
    $region41: #{tpu_custom_call.1} parent=5 // pred_check
      %p468 = pneg %p467
    $region42: #{tpu_custom_call.1} parent=5 // pred_check_branch
      %470 = sbr.rel (%p468) target = $region44
    $region43: #{tpu_custom_call.1} parent=5 // pred_region
      %s471 = ssub.s32 %s8, 2
      // Predicated region
      $region45: #{tpu_custom_call.1} parent=43 // pred_check
        %p472 = pneg %p107
      $region46: #{tpu_custom_call.1} parent=43 // pred_check_branch
        %474 = sbr.rel (%p472) target = $region48
      $region47: #{tpu_custom_call.1} parent=43 // pred_region
        %p475 = scmp.lt.s32.totalorder %s21, 1
        %s476 = scalar_select %p475, %s21, 1
        %s477 = smul.addr %s476, 8
        %s478 = scalar_lea.vmem %s2, %s477
      $region48: #{tpu_custom_call.1} parent=43 // pred_fallthru
        _
    $region44: #{tpu_custom_call.1} parent=5 // pred_fallthru
      _
  $region6: #{tpu_custom_call.1} parent=0 // loop_footer
    %s12 = sadd.s32 1, %s8
  $region7: #{tpu_custom_call.1} parent=0 // loop_footer_branch
    %7 = sbr.rel target = $region3
  $region8: #{tpu_custom_call.1} parent=0 // loop_exit
    _

</llo_original>
